<compile_context>
chip_gen: v6e
topology: v6e:2x2x1
jax: 0.10.0
libtpu: 0.0.40
codegen_flags: <defaults>
</compile_context>

<pallas_src>
import jax
import jax.numpy as jnp
from jax.experimental import pallas as pl
from jax.experimental.pallas import tpu as pltpu


def _pick_block_batch(B, N, K, E, itemsize,
                      vmem_budget=12 * 1024 * 1024, target_rows=512):
    """Pick how many images to process per grid step (must divide B)."""
    best = None
    for bb in range(1, B + 1):
        if B % bb:
            continue
        # (8,128) rule: the sublane dim of the patch block must be 8-aligned
        # unless it spans the full array.
        if bb != B and (bb * N) % 8 != 0:
            continue
        # Count everything double-buffered (Pallas revolving buffers).
        vmem = (2 * bb * N * K * itemsize            # patch tiles
                + 2 * bb * (N + 1) * E * itemsize    # output tiles
                + 2 * K * E * itemsize               # weights (constant index)
                + 2 * (N + 1) * E * itemsize)        # pos/cls (constant index)
        if vmem > vmem_budget:
            break
        best = bb
        if bb * N >= target_rows:                    # fat enough for the MXU
            break
    return best if best is not None else B


def patch_embedding(x, conv_w, conv_b, cls_token, pos_embed, patch_size):
    """x: (B, C, H, W) NCHW, conv_w: (E, C, P, P), conv_b: (E,),
    cls_token: (1, 1, E), pos_embed: (1, N+1, E). Returns (B, N+1, E)."""
    B, C, H, W = x.shape
    E = conv_w.shape[0]
    P = patch_size
    Hp, Wp = H // P, W // P
    N = Hp * Wp
    K = C * P * P
    itemsize = jnp.dtype(x.dtype).itemsize

    # --- glue: extract non-overlapping patches (pure layout ops) ---
    # (B, C, Hp, P, Wp, P) -> (B, Hp, Wp, C, P, P) -> (B*N, K)
    patches = x.reshape(B, C, Hp, P, Wp, P)
    patches = patches.transpose(0, 2, 4, 1, 3, 5).reshape(B * N, K)

    # weight (E, C, P, P) -> (K, E), so patch @ W == conv output
    w_mat = conv_w.reshape(E, K).T
    # fold conv bias / cls / pos precomputation out of the kernel
    pos = pos_embed.reshape(N + 1, E)
    pos_body = pos[1:, :] + conv_b[None, :]            # (N, E)
    cls_pre = cls_token.reshape(1, E) + pos[0:1, :]    # (1, E)

    bb = _pick_block_batch(B, N, K, E, itemsize)
    grid = (B // bb,)

    def kernel(patches_ref, w_ref, cls_ref, posb_ref, out_ref):
        # patches_ref: (bb*N, K)   flattened patches for bb images
        # w_ref:       (K, E)      conv weight as a GEMM operand
        # cls_ref:     (1, E)      cls_token + pos[0]
        # posb_ref:    (N, E)      pos[1:] + conv bias
        # out_ref:     (bb, N+1, E)
        xt = patches_ref[...]                                          # (bb*N, K)
        emb = jnp.dot(xt, w_ref[...], preferred_element_type=jnp.float32)
        body = emb.reshape(bb, N, E) + posb_ref[...][None]             # (bb, N, E)
        cls_rows = jnp.broadcast_to(cls_ref[...], (bb, 1, E))
        out_ref[:, pl.ds(0, 1), :] = cls_rows.astype(out_ref.dtype)
        out_ref[:, pl.ds(1, N), :] = body.astype(out_ref.dtype)

    cost = pl.CostEstimate(
        flops=2 * B * N * K * E,
        transcendentals=0,
        bytes_accessed=(B * N * K + K * E + (N + 1) * E + B * (N + 1) * E)
        * itemsize,
    )

    out = pl.pallas_call(
        kernel,
        out_shape=jax.ShapeDtypeStruct((B, N + 1, E), x.dtype),
        grid_spec=pltpu.PrefetchScalarGridSpec(
            num_scalar_prefetch=0,
            grid=grid,
            in_specs=[
                pl.BlockSpec((bb * N, K), lambda i: (i, 0)),
                pl.BlockSpec((K, E), lambda i: (0, 0)),
                pl.BlockSpec((1, E), lambda i: (0, 0)),
                pl.BlockSpec((N, E), lambda i: (0, 0)),
            ],
            out_specs=pl.BlockSpec((bb, N + 1, E), lambda i: (i, 0, 0)),
        ),
        compiler_params=pltpu.CompilerParams(
            dimension_semantics=("parallel",)),
        cost_estimate=cost,
    )(patches, w_mat, cls_pre, pos_body)
    # TODO(synk): nn.Dropout is identity at inference time; training-mode
    # dropout (PRNG mask + scale) is not implemented here.
    return out


def _reference(x, conv_w, conv_b, cls_token, pos_embed, patch_size):
    """Pure-JAX reference mirroring the PyTorch forward (eval mode)."""
    B = x.shape[0]
    y = jax.lax.conv_general_dilated(
        x, conv_w,
        window_strides=(patch_size, patch_size),
        padding="VALID",
        dimension_numbers=("NCHW", "OIHW", "NCHW"),
    ) + conv_b[None, :, None, None]
    B_, E, Hp, Wp = y.shape
    y = y.reshape(B_, E, Hp * Wp).transpose(0, 2, 1)           # (B, N, E)
    cls = jnp.broadcast_to(cls_token, (B, 1, cls_token.shape[-1]))
    y = jnp.concatenate([cls, y], axis=1) + pos_embed
    return y


if __name__ == "__main__":
    # Small shapes consistent with the module.
    batch, in_channel, spatial = 2, 4, 16
    patch_size, embed_dim = 4, 32
    num_patches = (spatial // patch_size) ** 2                   # 16

    key = jax.random.PRNGKey(0)
    k_x, k_w, k_b, k_cls, k_pos = jax.random.split(key, 5)

    x = jax.random.normal(k_x, (batch, in_channel, spatial, spatial), jnp.float32)
    conv_w = jax.random.normal(
        k_w, (embed_dim, in_channel, patch_size, patch_size), jnp.float32) * 0.02
    conv_b = jax.random.normal(k_b, (embed_dim,), jnp.float32) * 0.02
    cls_token = jax.random.normal(k_cls, (1, 1, embed_dim), jnp.float32)
    pos_embed = jax.random.normal(k_pos, (1, num_patches + 1, embed_dim), jnp.float32)

    out = patch_embedding(x, conv_w, conv_b, cls_token, pos_embed, patch_size)
    out = jax.block_until_ready(out)

    ref = _reference(x, conv_w, conv_b, cls_token, pos_embed, patch_size)
    assert out.shape == (batch, num_patches + 1, embed_dim), out.shape
    assert jnp.allclose(out, ref, atol=1e-4, rtol=1e-4), "mismatch vs reference"

    print("KERNEL_OK")
</pallas_src>

<mosaic_0001>
module attributes {stable_mosaic.version = 11 : i64} {
  func.func @kernel(%arg0: i32, %arg1: memref<32x64xf32, #tpu.memory_space<vmem>>, %arg2: memref<64x32xf32, #tpu.memory_space<vmem>>, %arg3: memref<1x32xf32, #tpu.memory_space<vmem>>, %arg4: memref<16x32xf32, #tpu.memory_space<vmem>>, %arg5: memref<2x17x32xf32, #tpu.memory_space<vmem>>) attributes {dimension_semantics = [#tpu.dimension_semantics<parallel>], iteration_bounds = array<i64: 1>, scalar_prefetch = 0 : i64, scratch_operands = 0 : i64, tpu.core_type = #tpu.core_type<tc>, window_params = [{transform_indices = @transform_0, window_bounds = array<i64: 32, 64>}, {pipeline_mode = #tpu.pipeline_mode<synchronous>, transform_indices = @transform_1, window_bounds = array<i64: 64, 32>}, {pipeline_mode = #tpu.pipeline_mode<synchronous>, transform_indices = @transform_2, window_bounds = array<i64: 1, 32>}, {pipeline_mode = #tpu.pipeline_mode<synchronous>, transform_indices = @transform_3, window_bounds = array<i64: 16, 32>}, {transform_indices = @transform_4, window_bounds = array<i64: 2, 17, 32>}]} {
    %c0 = arith.constant 0 : index
    %c0_0 = arith.constant 0 : index
    %0 = vector.load %arg1[%c0, %c0_0] : memref<32x64xf32, #tpu.memory_space<vmem>>, vector<32x64xf32>
    %c0_1 = arith.constant 0 : index
    %c0_2 = arith.constant 0 : index
    %1 = vector.load %arg2[%c0_1, %c0_2] : memref<64x32xf32, #tpu.memory_space<vmem>>, vector<64x32xf32>
    %cst = arith.constant dense<0.000000e+00> : vector<32x32xf32>
    %2 = tpu.matmul %0, %1, %cst {dimension_numbers = #tpu.dot_dimension_numbers<[1], [0], [0], [1], [0, 0, 1, 1], [], []>} : vector<32x64xf32>, vector<64x32xf32>, vector<32x32xf32> -> vector<32x32xf32>
    %3 = vector.shape_cast %2 : vector<32x32xf32> to vector<2x16x32xf32>
    %c0_3 = arith.constant 0 : index
    %c0_4 = arith.constant 0 : index
    %4 = vector.load %arg4[%c0_3, %c0_4] : memref<16x32xf32, #tpu.memory_space<vmem>>, vector<16x32xf32>
    %5 = vector.shape_cast %4 : vector<16x32xf32> to vector<1x16x32xf32>
    %6 = vector.broadcast %5 : vector<1x16x32xf32> to vector<2x16x32xf32>
    %7 = arith.addf %3, %6 : vector<2x16x32xf32>
    %c0_5 = arith.constant 0 : index
    %c0_6 = arith.constant 0 : index
    %8 = vector.load %arg3[%c0_5, %c0_6] : memref<1x32xf32, #tpu.memory_space<vmem>>, vector<1x32xf32>
    %9 = vector.shape_cast %8 : vector<1x32xf32> to vector<1x1x32xf32>
    %10 = vector.broadcast %9 : vector<1x1x32xf32> to vector<2x1x32xf32>
    %c0_7 = arith.constant 0 : index
    %c0_8 = arith.constant 0 : index
    %c0_9 = arith.constant 0 : index
    %11 = vector.load %arg5[%c0_7, %c0_8, %c0_9] : memref<2x17x32xf32, #tpu.memory_space<vmem>>, vector<2x1x32xf32>
    tpu.vector_store %arg5[%c0_7, %c0_8, %c0_9], %10 {strides = array<i32>} : memref<2x17x32xf32, #tpu.memory_space<vmem>>, vector<2x1x32xf32>,
    %c0_10 = arith.constant 0 : index
    %c1 = arith.constant 1 : index
    %c0_11 = arith.constant 0 : index
    %12 = vector.load %arg5[%c0_10, %c1, %c0_11] : memref<2x17x32xf32, #tpu.memory_space<vmem>>, vector<2x16x32xf32>
    tpu.vector_store %arg5[%c0_10, %c1, %c0_11], %7 {strides = array<i32>} : memref<2x17x32xf32, #tpu.memory_space<vmem>>, vector<2x16x32xf32>,
    return
  }
  func.func @transform_0(%arg0: i32) -> (i32, i32) {
    %c0_i32 = arith.constant 0 : i32
    %c0_i32_0 = arith.constant 0 : i32
    return %arg0, %c0_i32 : i32, i32
  }
  func.func @transform_1(%arg0: i32) -> (i32, i32) {
    %c0_i32 = arith.constant 0 : i32
    %c0_i32_0 = arith.constant 0 : i32
    %c0_i32_1 = arith.constant 0 : i32
    return %c0_i32, %c0_i32_0 : i32, i32
  }
  func.func @transform_2(%arg0: i32) -> (i32, i32) {
    %c0_i32 = arith.constant 0 : i32
    %c0_i32_0 = arith.constant 0 : i32
    %c0_i32_1 = arith.constant 0 : i32
    return %c0_i32, %c0_i32_0 : i32, i32
  }
  func.func @transform_3(%arg0: i32) -> (i32, i32) {
    %c0_i32 = arith.constant 0 : i32
    %c0_i32_0 = arith.constant 0 : i32
    %c0_i32_1 = arith.constant 0 : i32
    return %c0_i32, %c0_i32_0 : i32, i32
  }
  func.func @transform_4(%arg0: i32) -> (i32, i32, i32) {
    %c0_i32 = arith.constant 0 : i32
    %c0_i32_0 = arith.constant 0 : i32
    %c0_i32_1 = arith.constant 0 : i32
    return %arg0, %c0_i32, %c0_i32_0 : i32, i32, i32
  }
}

</mosaic_0001>

<llo_original>
// kernel: tpu_custom_call.1
$region0: #{tpu_custom_call.1}
  #allocation0 [shape = 'u32[]', space=smem, size = 0x4, offset = 0x4, fixed_abs, tag = 'smem constant byte address 0x4 - core index']
  #allocation1 [shape = 'u32[144,128]{1,0:T(1,128)}', space=vmem, size = 0x12000, scoped, tag = 'internal scratch']
  %s0 = inlined_call_operand.vmem [shape: f32[32,64], index: 0, kind: input, shape index: {}]
  %s1 = inlined_call_operand.vmem [shape: f32[64,32], index: 1, kind: input, shape index: {}]
  %s2 = inlined_call_operand.vmem [shape: f32[1,32], index: 2, kind: input, shape index: {}]
  %s3 = inlined_call_operand.vmem [shape: f32[16,32], index: 3, kind: input, shape index: {}]
  %s4 = inlined_call_operand.vmem [shape: f32[2,17,32], index: 4, kind: output, shape index: {}]
  %s5 = sld [smem:[#allocation0]]
  $region26: #{tpu_custom_call.1} parent=0
    _
  %s7 = ssub.s32 1, %s5
  %s8 = scalar_select 0, %s7, %s5
  // Predicated region
  $region2: #{tpu_custom_call.1} parent=0 // pred_check
    _
  $region3: #{tpu_custom_call.1} parent=0 // pred_check_branch
    %10 = sbr.rel (0) target = $region5
  $region4: #{tpu_custom_call.1} parent=0 // pred_region
    _
  $region5: #{tpu_custom_call.1} parent=0 // pred_fallthru
    _
  // Predicated region
  $region6: #{tpu_custom_call.1} parent=0 // pred_check
    _
  $region7: #{tpu_custom_call.1} parent=0 // pred_check_branch
    %12 = sbr.rel (0) target = $region9
  $region8: #{tpu_custom_call.1} parent=0 // pred_region
    _
  $region9: #{tpu_custom_call.1} parent=0 // pred_fallthru
    _
  // Predicated region
  $region10: #{tpu_custom_call.1} parent=0 // pred_check
    _
  $region11: #{tpu_custom_call.1} parent=0 // pred_check_branch
    %14 = sbr.rel (0) target = $region13
  $region12: #{tpu_custom_call.1} parent=0 // pred_region
    _
  $region13: #{tpu_custom_call.1} parent=0 // pred_fallthru
    _
  // Predicated region
  $region14: #{tpu_custom_call.1} parent=0 // pred_check
    _
  $region15: #{tpu_custom_call.1} parent=0 // pred_check_branch
    %16 = sbr.rel (0) target = $region17
  $region16: #{tpu_custom_call.1} parent=0 // pred_region
    _
  $region17: #{tpu_custom_call.1} parent=0 // pred_fallthru
    _
  %v17 = vld [vmem:[%s0] sm:$0xff]
  %v18 = vld [vmem:[%s0 + $0x8] sm:$0xff]
  %v19 = vld [vmem:[%s0 + $0x10] sm:$0xff]
  %v20 = vld [vmem:[%s0 + $0x18] sm:$0xff]
  %v21 = vld [vmem:[%s1] sm:$0xff]
  %v22 = vld [vmem:[%s1 + $0x8] sm:$0xff]
  %v23 = vld [vmem:[%s1 + $0x10] sm:$0xff]
  %v24 = vld [vmem:[%s1 + $0x18] sm:$0xff]
  %v25 = vld [vmem:[%s1 + $0x20] sm:$0xff]
  %v26 = vld [vmem:[%s1 + $0x28] sm:$0xff]
  %v27 = vld [vmem:[%s1 + $0x30] sm:$0xff]
  %v28 = vld [vmem:[%s1 + $0x38] sm:$0xff]
  %vm29 = vcmask 523264
  %v31 = vsel %vm29, %v17, 0
  %v34 = vsel %vm29, %v18, 0
  %v37 = vsel %vm29, %v19, 0
  %v40 = vsel %vm29, %v20, 0
  %42 = vmatprep.subr.mxu0 0.0
  %43 = vmatpush1.msra.mxu0 0.0
  %44 = vmatprep.subr.mxu0 0.0
  %45 = vmatpush1.msra.mxu0 0.0
  %46 = vmatprep.subr.mxu0 0.0
  %47 = vmatpush1.msra.mxu0 0.0
  %48 = vmatprep.subr.mxu0 0.0
  %49 = vmatpush1.msra.mxu0 0.0
  %50 = vmatprep.subr.mxu0 0.0
  %51 = vmatpush1.msra.mxu0 0.0
  %52 = vmatprep.subr.mxu0 0.0
  %53 = vmatpush1.msra.mxu0 0.0
  %54 = vmatprep.subr.mxu0 0.0
  %55 = vmatpush1.msra.mxu0 0.0
  %56 = vmatprep.subr.mxu0 0.0
  %57 = vmatpush1.msra.mxu0 0.0
  %58 = vmatprep.subr.mxu0 0.0
  %59 = vmatpush1.msra.mxu0 %v28
  %60 = vmatprep.subr.mxu0 0.0
  %61 = vmatpush1.msra.mxu0 %v27
  %62 = vmatprep.subr.mxu0 0.0
  %63 = vmatpush1.msra.mxu0 %v26
  %64 = vmatprep.subr.mxu0 0.0
  %65 = vmatpush1.msra.mxu0 %v25
  %66 = vmatprep.subr.mxu0 0.0
  %67 = vmatpush1.msra.mxu0 %v24
  %68 = vmatprep.subr.mxu0 0.0
  %69 = vmatpush1.msra.mxu0 %v23
  %70 = vmatprep.subr.mxu0 0.0
  %71 = vmatpush1.msra.mxu0 %v22
  %72 = vmatprep.subr.mxu0 0.0
  %73 = vmatpush1.msra.mxu0 %v21
  %74 = vmatprep.subr.mxu0 0.0
  %75 = vmatpush2.msra.mxu0 0.0
  %76 = vmatprep.subr.mxu0 0.0
  %77 = vmatpush2.msra.mxu0 0.0
  %78 = vmatprep.subr.mxu0 0.0
  %79 = vmatpush2.msra.mxu0 0.0
  %80 = vmatprep.subr.mxu0 0.0
  %81 = vmatpush2.msra.mxu0 0.0
  %82 = vmatprep.subr.mxu0 0.0
  %83 = vmatpush2.msra.mxu0 0.0
  %84 = vmatprep.subr.mxu0 0.0
  %85 = vmatpush2.msra.mxu0 0.0
  %86 = vmatprep.subr.mxu0 0.0
  %87 = vmatpush2.msra.mxu0 0.0
  %88 = vmatprep.subr.mxu0 0.0
  %89 = vmatpush2.msra.mxu0 0.0
  %90 = vmatprep.subr.mxu0 0.0
  %91 = vmatpush2.msra.mxu0 0.0
  %92 = vmatprep.subr.mxu0 0.0
  %93 = vmatpush2.msra.mxu0 0.0
  %94 = vmatprep.subr.mxu0 0.0
  %95 = vmatpush2.msra.mxu0 0.0
  %96 = vmatprep.subr.mxu0 0.0
  %97 = vmatpush2.msra.mxu0 0.0
  %98 = vmatprep.subr.mxu0 0.0
  %99 = vmatpush2.msra.mxu0 0.0
  %100 = vmatprep.subr.mxu0 0.0
  %101 = vmatpush2.msra.mxu0 0.0
  %102 = vmatprep.subr.mxu0 0.0
  %103 = vmatpush2.msra.mxu0 0.0
  %104 = vmatprep.subr.mxu0 0.0
  %105 = vmatpush2.msra.mxu0 0.0
  %106 = vmatprep.mubr.f32.mxu0 0.0
  %107 = vmatmul.mubr.f32.gmra.mxu0 %v31
  %v108 = vpop.f32.mrf.mxu0
  %v109 = vadd.f32 0.0, %v108
  %v110 = vpop.f32.mrf.mxu0
  %111 = vmatprep.mubr.f32.mxu0 0.0
  %112 = vmatmul.mubr.f32.gmra.mxu0 %v34
  %v113 = vpop.f32.mrf.mxu0
  %v114 = vadd.f32 0.0, %v113
  %v115 = vpop.f32.mrf.mxu0
  %116 = vmatprep.mubr.f32.mxu0 0.0
  %117 = vmatmul.mubr.f32.gmra.mxu0 %v37
  %v118 = vpop.f32.mrf.mxu0
  %v119 = vadd.f32 0.0, %v118
  %v120 = vpop.f32.mrf.mxu0
  %121 = vmatprep.mubr.f32.mxu0 0.0
  %122 = vmatmul.mubr.f32.gmra.mxu0 %v40
  %v123 = vpop.f32.mrf.mxu0
  %v124 = vadd.f32 0.0, %v123
  %v125 = vpop.f32.mrf.mxu0
  %126 = vdwg.mxu0
  %v127 = vld [vmem:[%s3] sm:$0xff]
  %v128 = vld [vmem:[%s3 + $0x8] sm:$0xff]
  %v129 = vadd.f32 %v109, %v127
  %v130 = vadd.f32 %v114, %v128
  %v131 = vadd.f32 %v119, %v127
  %v132 = vadd.f32 %v124, %v128
  %v133 = vld [vmem:[%s2] sm:$0x1]
  %vm134 = vcmask 253952
  %135 = vst.msk [vmem:[%s4] sm:$0x1] %vm134, %v133
  %136 = vst.msk [vmem:[%s4 + $0x18] sm:$0x1] %vm134, %v133
  %vm137 = vcmask 261120
  %138 = vst.msk [vmem:[%s4 + $0x1] sm:$0xff] %vm137, %v129
  %139 = vst.msk [vmem:[%s4 + $0x9] sm:$0xff] %vm137, %v130
  %140 = vst.msk [vmem:[%s4 + $0x19] sm:$0xff] %vm137, %v131
  %141 = vst.msk [vmem:[%s4 + $0x21] sm:$0xff] %vm137, %v132
  // Predicated region
  $region18: #{tpu_custom_call.1} parent=0 // pred_check
    _
  $region19: #{tpu_custom_call.1} parent=0 // pred_check_branch
    %143 = sbr.rel (0) target = $region21
  $region20: #{tpu_custom_call.1} parent=0 // pred_region
    _
  $region21: #{tpu_custom_call.1} parent=0 // pred_fallthru
    _
  // Predicated region
  $region22: #{tpu_custom_call.1} parent=0 // pred_check
    _
  $region23: #{tpu_custom_call.1} parent=0 // pred_check_branch
    %145 = sbr.rel (0) target = $region25
  $region24: #{tpu_custom_call.1} parent=0 // pred_region
    _
  $region25: #{tpu_custom_call.1} parent=0 // pred_fallthru
    _

</llo_original>
